<compile_context>
chip_gen: v7x
topology: tpu7x:2x2x1
jax: 0.10.0
libtpu: 0.0.40
codegen_flags: <defaults>
</compile_context>

<pallas_src>
import jax
import jax.numpy as jnp
from jax.experimental import pallas as pl
from jax.experimental.pallas import tpu as pltpu


def reaction_kernel(c_ref, wbt_ref, bb_ref, wout_ref, dc_ref):
    # c_ref   : (tile_m, p*S)   p batch rows packed per row
    # wbt_ref : (p*2R, p*S)     kron(I_p, [w_reactant | w_product]^T)
    # bb_ref  : (p*2R, 1)       tiled [b_f ; b_r]
    # wout_ref: (p*S, p*2R)     kron(I_p, [w | -w])
    # dc_ref  : (tile_m, p*S)   packed output block
    ct = c_ref[...].astype(jnp.float32).T          # (p*S, tile_m): batch on lanes
    logct = jnp.log(ct)                            # dense sublanes+lanes: no EUP waste
    z = jnp.exp(
        jnp.dot(wbt_ref[...].astype(jnp.float32), logct,
                preferred_element_type=jnp.float32)
        + bb_ref[...].astype(jnp.float32)
    )                                              # (p*2R, tile_m) = [z_f ; z_r] packed
    dct = jnp.dot(wout_ref[...].astype(jnp.float32), z,
                  preferred_element_type=jnp.float32)   # (p*S, tile_m)
    dc_ref[...] = dct.T.astype(dc_ref.dtype)       # transpose back, lane layout of input


def _choose_tile_m(m, max_tile):
    """Largest sublane-aligned tile that divides m, preferring >=2 grid steps
    (v7x has 2 TensorCores) as long as each step keeps >=512 packed rows."""
    cands = [c for c in (16384, 8192, 4096, 2048, 1024, 512, 256, 128, 64, 32, 16, 8)
             if c <= max_tile and c <= m and m % c == 0]
    if not cands:
        return m                      # block == full dim is always legal
    largest = cands[0]
    if m // largest >= 2:
        return largest
    for c in cands[1:]:
        if c >= 512:                  # don't shrink tiny just to split the grid
            return c
    return largest


def multiscale_reaction_forward(c, w, b_f, b_r, *, max_batch_tile=4096):
    N, S = c.shape
    S2, R = w.shape
    assert S == S2, "w must be (num_species, num_reaction)"
    assert b_f.shape == (1, R) and b_r.shape == (1, R)

    # Packing factor p: smallest p with (p*S) % 8 == 0 (dense sublanes after
    # the in-kernel transpose) and N % p == 0 (free row-major reshape).
    p = 1
    if S % 8 != 0:
        for cand in (2, 4, 8):
            if (cand * S) % 8 == 0 and N % cand == 0:
                p = cand
                break
    M, SP, RP = N // p, p * S, p * 2 * R

    # ---- grid-invariant weight preparation (hoisted out of the grid loop)
    w32 = w.astype(jnp.float32)
    w_reactant = -jnp.minimum(w32, 0.0)              # -clamp(w, max=0)
    w_product = jnp.maximum(w32, 0.0)                #  clamp(w, min=0)
    eye_p = jnp.eye(p, dtype=jnp.float32)
    wbt = jnp.kron(eye_p, jnp.concatenate([w_reactant, w_product], axis=1).T)   # (RP, SP)
    bb = jnp.tile(jnp.concatenate([b_f, b_r], axis=1).astype(jnp.float32).T,
                  (p, 1))                                                        # (RP, 1)
    w_out = jnp.kron(eye_p, jnp.concatenate([w32, -w32], axis=1))                # (SP, RP)

    c_pk = c.reshape(M, SP)          # free (row-major) reshape: no HBM transpose

    tile_m = _choose_tile_m(M, max(8, max_batch_tile // p))
    grid = (M // tile_m,)

    # Advisory cost estimate (useful math only; block-diagonal zeros excluded).
    cost = pl.CostEstimate(
        flops=int(8 * N * S * R),
        transcendentals=int(N * (S + 2 * R)),
        bytes_accessed=int(4 * (2 * N * S + 2 * SP * RP + RP)),
    )

    # Double-buffered in/out blocks + f32 intermediates; only raise the scoped
    # VMEM limit if a very large tile approaches v5e's 16 MiB default.
    est_vmem = 4 * (4 * tile_m * SP + tile_m * (2 * SP + 2 * RP) + 4 * SP * RP)
    vmem_limit = None
    if est_vmem > 12 * 1024 * 1024:
        vmem_limit = min(2 * est_vmem, 96 * 1024 * 1024)

    dc_pk = pl.pallas_call(
        reaction_kernel,
        out_shape=jax.ShapeDtypeStruct((M, SP), c.dtype),
        grid_spec=pltpu.PrefetchScalarGridSpec(
            num_scalar_prefetch=0,
            grid=grid,
            in_specs=[
                pl.BlockSpec((tile_m, SP), lambda i: (i, 0)),
                pl.BlockSpec((RP, SP), lambda i: (0, 0)),
                pl.BlockSpec((RP, 1), lambda i: (0, 0)),
                pl.BlockSpec((SP, RP), lambda i: (0, 0)),
            ],
            out_specs=pl.BlockSpec((tile_m, SP), lambda i: (i, 0)),
        ),
        compiler_params=pltpu.CompilerParams(
            dimension_semantics=("parallel",),
            vmem_limit_bytes=vmem_limit,
        ),
        cost_estimate=cost,
    )(c_pk, wbt, bb, w_out)

    return dc_pk.reshape(N, S)       # free reshape back to (batch, species)


def reference_forward(c, w, b_f, b_r):
    w_reactant = -jnp.minimum(w, 0.0)
    w_product = jnp.maximum(w, 0.0)
    z_f = jnp.exp(jnp.log(c) @ w_reactant + b_f)
    z_r = jnp.exp(jnp.log(c) @ w_product + b_r)
    return (z_f - z_r) @ w.T


if __name__ == "__main__":
    num_species = 4
    num_reaction = 8
    batch = 2048   # tiny in bytes (32 KiB) but exercises packing + a 2-step grid

    key = jax.random.PRNGKey(0)
    k_w, k_bf, k_br, k_c = jax.random.split(key, 4)

    # Parameters: torch.nn.init.uniform_(p, -0.5, 0.5), deterministic here.
    w = jax.random.uniform(k_w, (num_species, num_reaction),
                           minval=-0.5, maxval=0.5, dtype=jnp.float32)
    b_f = jax.random.uniform(k_bf, (1, num_reaction),
                             minval=-0.5, maxval=0.5, dtype=jnp.float32)
    b_r = jax.random.uniform(k_br, (1, num_reaction),
                             minval=-0.5, maxval=0.5, dtype=jnp.float32)

    # Concentrations must be positive (torch.log); mirror eps-clamp from train().
    c = jax.random.uniform(k_c, (batch, num_species),
                           minval=0.1, maxval=2.0, dtype=jnp.float32)
    c = jnp.maximum(c, 1e-30)

    fwd = jax.jit(multiscale_reaction_forward)
    dc = jax.block_until_ready(fwd(c, w, b_f, b_r))

    dc_ref = reference_forward(c, w, b_f, b_r)
    assert dc.shape == (batch, num_species)
    assert jnp.allclose(dc, dc_ref, rtol=1e-5, atol=1e-5), "mismatch vs reference"

    print("KERNEL_OK")
</pallas_src>

<mosaic_0001>
module attributes {stable_mosaic.version = 11 : i64} {
  func.func @reaction_kernel(%arg0: i32, %arg1: memref<512x8xf32, #tpu.memory_space<vmem>>, %arg2: memref<32x8xf32, #tpu.memory_space<vmem>>, %arg3: memref<32x1xf32, #tpu.memory_space<vmem>>, %arg4: memref<8x32xf32, #tpu.memory_space<vmem>>, %arg5: memref<512x8xf32, #tpu.memory_space<vmem>>) attributes {dimension_semantics = [#tpu.dimension_semantics<parallel>], iteration_bounds = array<i64: 2>, scalar_prefetch = 0 : i64, scratch_operands = 0 : i64, tpu.core_type = #tpu.core_type<tc>, window_params = [{transform_indices = @transform_0, window_bounds = array<i64: 512, 8>}, {pipeline_mode = #tpu.pipeline_mode<synchronous>, transform_indices = @transform_1, window_bounds = array<i64: 32, 8>}, {pipeline_mode = #tpu.pipeline_mode<synchronous>, transform_indices = @transform_2, window_bounds = array<i64: 32, 1>}, {pipeline_mode = #tpu.pipeline_mode<synchronous>, transform_indices = @transform_3, window_bounds = array<i64: 8, 32>}, {transform_indices = @transform_4, window_bounds = array<i64: 512, 8>}]} {
    %c0 = arith.constant 0 : index
    %c0_0 = arith.constant 0 : index
    %0 = vector.load %arg1[%c0, %c0_0] : memref<512x8xf32, #tpu.memory_space<vmem>>, vector<512x8xf32>
    %1 = tpu.transpose %0, [1, 0] : vector<512x8xf32> -> vector<8x512xf32>
    %2 = math.log %1 : vector<8x512xf32>
    %c0_1 = arith.constant 0 : index
    %c0_2 = arith.constant 0 : index
    %3 = vector.load %arg2[%c0_1, %c0_2] : memref<32x8xf32, #tpu.memory_space<vmem>>, vector<32x8xf32>
    %cst = arith.constant dense<0.000000e+00> : vector<32x512xf32>
    %4 = tpu.matmul %3, %2, %cst {dimension_numbers = #tpu.dot_dimension_numbers<[1], [0], [0], [1], [0, 0, 1, 1], [], []>} : vector<32x8xf32>, vector<8x512xf32>, vector<32x512xf32> -> vector<32x512xf32>
    %c0_3 = arith.constant 0 : index
    %c0_4 = arith.constant 0 : index
    %5 = vector.load %arg3[%c0_3, %c0_4] : memref<32x1xf32, #tpu.memory_space<vmem>>, vector<32x1xf32>
    %6 = vector.broadcast %5 : vector<32x1xf32> to vector<32x512xf32>
    %7 = arith.addf %4, %6 : vector<32x512xf32>
    %8 = math.exp %7 : vector<32x512xf32>
    %c0_5 = arith.constant 0 : index
    %c0_6 = arith.constant 0 : index
    %9 = vector.load %arg4[%c0_5, %c0_6] : memref<8x32xf32, #tpu.memory_space<vmem>>, vector<8x32xf32>
    %cst_7 = arith.constant dense<0.000000e+00> : vector<8x512xf32>
    %10 = tpu.matmul %9, %8, %cst_7 {dimension_numbers = #tpu.dot_dimension_numbers<[1], [0], [0], [1], [0, 0, 1, 1], [], []>} : vector<8x32xf32>, vector<32x512xf32>, vector<8x512xf32> -> vector<8x512xf32>
    %11 = tpu.transpose %10, [1, 0] : vector<8x512xf32> -> vector<512x8xf32>
    %c0_8 = arith.constant 0 : index
    %c0_9 = arith.constant 0 : index
    %12 = vector.load %arg5[%c0_8, %c0_9] : memref<512x8xf32, #tpu.memory_space<vmem>>, vector<512x8xf32>
    tpu.vector_store %arg5[%c0_8, %c0_9], %11 {strides = array<i32>} : memref<512x8xf32, #tpu.memory_space<vmem>>, vector<512x8xf32>,
    return
  }
  func.func @transform_0(%arg0: i32) -> (i32, i32) {
    %c0_i32 = arith.constant 0 : i32
    %c0_i32_0 = arith.constant 0 : i32
    return %arg0, %c0_i32 : i32, i32
  }
  func.func @transform_1(%arg0: i32) -> (i32, i32) {
    %c0_i32 = arith.constant 0 : i32
    %c0_i32_0 = arith.constant 0 : i32
    %c0_i32_1 = arith.constant 0 : i32
    return %c0_i32, %c0_i32_0 : i32, i32
  }
  func.func @transform_2(%arg0: i32) -> (i32, i32) {
    %c0_i32 = arith.constant 0 : i32
    %c0_i32_0 = arith.constant 0 : i32
    %c0_i32_1 = arith.constant 0 : i32
    return %c0_i32, %c0_i32_0 : i32, i32
  }
  func.func @transform_3(%arg0: i32) -> (i32, i32) {
    %c0_i32 = arith.constant 0 : i32
    %c0_i32_0 = arith.constant 0 : i32
    %c0_i32_1 = arith.constant 0 : i32
    return %c0_i32, %c0_i32_0 : i32, i32
  }
  func.func @transform_4(%arg0: i32) -> (i32, i32) {
    %c0_i32 = arith.constant 0 : i32
    %c0_i32_0 = arith.constant 0 : i32
    return %arg0, %c0_i32 : i32, i32
  }
}

</mosaic_0001>

<llo_original>
// kernel: multiscale_reaction_forward.1
$region0: #{multiscale_reaction_forward.1}
  #allocation0 [shape = 'u32[]', space=smem, size = 0x4, offset = 0x4, fixed_abs, tag = 'smem constant byte address 0x4 - core index']
  #allocation1 [shape = 'u32[144,128]{1,0:T(1,128)}', space=vmem, size = 0x12000, scoped, tag = 'internal scratch']
  %s0 = inlined_call_operand.vmem [shape: f32[1024,8], index: 0, kind: input, shape index: {}]
  %s1 = inlined_call_operand.vmem [shape: f32[32,8], index: 1, kind: input, shape index: {}]
  %s2 = inlined_call_operand.vmem [shape: f32[32,1], index: 2, kind: input, shape index: {}]
  %s3 = inlined_call_operand.vmem [shape: f32[8,32], index: 3, kind: input, shape index: {}]
  %s4 = inlined_call_operand.vmem [shape: f32[1024,8], index: 4, kind: output, shape index: {}]
  %s5 = sld [smem:[#allocation0]]
  $region49: #{multiscale_reaction_forward.1} parent=0
    _
  %s7 = ssub.s32 1, %s5
  %s8 = scalar_select 0, %s7, %s5
  loop: start=0, step=1, limit=4
  $region2: #{multiscale_reaction_forward.1} parent=0 // loop_pre_header
    _
  $region3: #{multiscale_reaction_forward.1} parent=0 // loop_header
    %s10 = sphi 0, %s14
    %p11 = scmp.ge.s32.totalorder %s10, 4
    %s20 = sphi 0, %s22
    %s23 = sphi 0, %s20
    %s24 = sphi 0, %s23
    %s40 = sphi 0, %s24
    %s44 = sphi 0, %s44
    %s46 = sphi 0, %s44
    %s47 = sphi 0, %s46
    %s61 = sphi 0, %s47
    %s65 = sphi 0, %s65
    %s67 = sphi 0, %s65
    %s68 = sphi 0, %s67
    %s82 = sphi 0, %s68
    %s86 = sphi 0, %s86
    %s88 = sphi 0, %s86
    %s89 = sphi 0, %s88
    %s103 = sphi 0, %s89
    %s109 = sphi 0, %s111
    %s112 = sphi 0, %s109
    %s113 = sphi 0, %s112
    %s129 = sphi 0, %s113
  $region4: #{multiscale_reaction_forward.1} parent=0 // loop_header_branch
    %13 = sbr.rel (%p11) target = $region8
  $region5: #{multiscale_reaction_forward.1} parent=0 // loop_body
    %s15 = ssub.s32 %s10, 1
    %s16 = ssub.s32 %s10, 2
    %s17 = sadd.s32 %s10, 1
    %s18 = ssub.s32 %s10, %s17
    %p19 = scmp.eq.s32.totalorder %s18, 0
    %s21 = sadd.s32 %s20, 1
    %s22 = scalar_select %p19, %s20, %s21
    %p25 = pneg %p19
    %p26 = scmp.eq.s32.totalorder %s10, 1
    %p27 = por %p25, %p26
    %p28 = scmp.ne.s32.totalorder %s20, %s23
    %p29 = scmp.eq.s32.totalorder %s10, 0
    %p30 = por %p28, %p29
    %p31 = scmp.ne.s32.totalorder %s20, %s23
    %p32 = scmp.eq.s32.totalorder %s15, 1
    %p33 = por %p31, %p32
    %p34 = scmp.ne.s32.totalorder %s23, %s24
    %p35 = scmp.eq.s32.totalorder %s15, 0
    %p36 = por %p34, %p35
    %p37 = scmp.ne.s32.totalorder %s23, %s24
    %p38 = scmp.eq.s32.totalorder %s16, 1
    %p39 = por %p37, %p38
    %p41 = scmp.ne.s32.totalorder %s24, %s40
    %p42 = scmp.eq.s32.totalorder %s16, 0
    %p43 = por %p41, %p42
    %s45 = sadd.s32 %s44, 1
    %p48 = scmp.eq.s32.totalorder %s10, 1
    %p49 = scmp.ne.s32.totalorder %s44, %s46
    %p50 = scmp.eq.s32.totalorder %s10, 0
    %p51 = por %p49, %p50
    %p52 = scmp.ne.s32.totalorder %s44, %s46
    %p53 = scmp.eq.s32.totalorder %s15, 1
    %p54 = por %p52, %p53
    %p55 = scmp.ne.s32.totalorder %s46, %s47
    %p56 = scmp.eq.s32.totalorder %s15, 0
    %p57 = por %p55, %p56
    %p58 = scmp.ne.s32.totalorder %s46, %s47
    %p59 = scmp.eq.s32.totalorder %s16, 1
    %p60 = por %p58, %p59
    %p62 = scmp.ne.s32.totalorder %s47, %s61
    %p63 = scmp.eq.s32.totalorder %s16, 0
    %p64 = por %p62, %p63
    %s66 = sadd.s32 %s65, 1
    %p69 = scmp.eq.s32.totalorder %s10, 1
    %p70 = scmp.ne.s32.totalorder %s65, %s67
    %p71 = scmp.eq.s32.totalorder %s10, 0
    %p72 = por %p70, %p71
    %p73 = scmp.ne.s32.totalorder %s65, %s67
    %p74 = scmp.eq.s32.totalorder %s15, 1
    %p75 = por %p73, %p74
    %p76 = scmp.ne.s32.totalorder %s67, %s68
    %p77 = scmp.eq.s32.totalorder %s15, 0
    %p78 = por %p76, %p77
    %p79 = scmp.ne.s32.totalorder %s67, %s68
    %p80 = scmp.eq.s32.totalorder %s16, 1
    %p81 = por %p79, %p80
    %p83 = scmp.ne.s32.totalorder %s68, %s82
    %p84 = scmp.eq.s32.totalorder %s16, 0
    %p85 = por %p83, %p84
    %s87 = sadd.s32 %s86, 1
    %p90 = scmp.eq.s32.totalorder %s10, 1
    %p91 = scmp.ne.s32.totalorder %s86, %s88
    %p92 = scmp.eq.s32.totalorder %s10, 0
    %p93 = por %p91, %p92
    %p94 = scmp.ne.s32.totalorder %s86, %s88
    %p95 = scmp.eq.s32.totalorder %s15, 1
    %p96 = por %p94, %p95
    %p97 = scmp.ne.s32.totalorder %s88, %s89
    %p98 = scmp.eq.s32.totalorder %s15, 0
    %p99 = por %p97, %p98
    %p100 = scmp.ne.s32.totalorder %s88, %s89
    %p101 = scmp.eq.s32.totalorder %s16, 1
    %p102 = por %p100, %p101
    %p104 = scmp.ne.s32.totalorder %s89, %s103
    %p105 = scmp.eq.s32.totalorder %s16, 0
    %p106 = por %p104, %p105
    %s107 = ssub.s32 %s10, %s17
    %p108 = scmp.eq.s32.totalorder %s107, 0
    %s110 = sadd.s32 %s109, 1
    %s111 = scalar_select %p108, %s109, %s110
    %p114 = pneg %p108
    %p115 = scmp.eq.s32.totalorder %s10, 1
    %p116 = por %p114, %p115
    %p117 = scmp.ne.s32.totalorder %s109, %s112
    %p118 = scmp.eq.s32.totalorder %s10, 0
    %p119 = por %p117, %p118
    %p120 = scmp.ne.s32.totalorder %s109, %s112
    %p121 = scmp.eq.s32.totalorder %s15, 1
    %p122 = por %p120, %p121
    %p123 = scmp.ne.s32.totalorder %s112, %s113
    %p124 = scmp.eq.s32.totalorder %s15, 0
    %p125 = por %p123, %p124
    %p126 = scmp.ne.s32.totalorder %s112, %s113
    %p127 = scmp.eq.s32.totalorder %s16, 1
    %p128 = por %p126, %p127
    %p130 = scmp.ne.s32.totalorder %s113, %s129
    %p131 = scmp.eq.s32.totalorder %s16, 0
    %p132 = por %p130, %p131
    %p133 = scmp.le.s32.totalorder 1, %s10
    %p134 = scmp.lt.s32.totalorder %s10, 3
    %p135 = pnand %p133, %p134
    %p136 = pneg %p135
    // Predicated region
    $region9: #{multiscale_reaction_forward.1} parent=5 // pred_check
      _
    $region10: #{multiscale_reaction_forward.1} parent=5 // pred_check_branch
      %138 = sbr.rel (%p135) target = $region12
    $region11: #{multiscale_reaction_forward.1} parent=5 // pred_region
      %s139 = ssub.s32 %s10, 1
      // Predicated region
      $region13: #{multiscale_reaction_forward.1} parent=11 // pred_check
        %p140 = pneg %p57
      $region14: #{multiscale_reaction_forward.1} parent=11 // pred_check_branch
        %142 = sbr.rel (%p140) target = $region16
      $region15: #{multiscale_reaction_forward.1} parent=11 // pred_region
        _
      $region16: #{multiscale_reaction_forward.1} parent=11 // pred_fallthru
        _
      // Predicated region
      $region17: #{multiscale_reaction_forward.1} parent=11 // pred_check
        %p143 = pneg %p78
      $region18: #{multiscale_reaction_forward.1} parent=11 // pred_check_branch
        %145 = sbr.rel (%p143) target = $region20
      $region19: #{multiscale_reaction_forward.1} parent=11 // pred_region
        _
      $region20: #{multiscale_reaction_forward.1} parent=11 // pred_fallthru
        _
      // Predicated region
      $region21: #{multiscale_reaction_forward.1} parent=11 // pred_check
        %p146 = pneg %p99
      $region22: #{multiscale_reaction_forward.1} parent=11 // pred_check_branch
        %148 = sbr.rel (%p146) target = $region24
      $region23: #{multiscale_reaction_forward.1} parent=11 // pred_region
        _
      $region24: #{multiscale_reaction_forward.1} parent=11 // pred_fallthru
        _
    $region12: #{multiscale_reaction_forward.1} parent=5 // pred_fallthru
      _
    %p149 = scmp.lt.s32.totalorder %s10, 2
    // Predicated region
    $region25: #{multiscale_reaction_forward.1} parent=5 // pred_check
      %p150 = pneg %p149
    $region26: #{multiscale_reaction_forward.1} parent=5 // pred_check_branch
      %152 = sbr.rel (%p150) target = $region28
    $region27: #{multiscale_reaction_forward.1} parent=5 // pred_region
      // Predicated region
      $region29: #{multiscale_reaction_forward.1} parent=27 // pred_check
        %p153 = pneg %p30
      $region30: #{multiscale_reaction_forward.1} parent=27 // pred_check_branch
        %155 = sbr.rel (%p153) target = $region32
      $region31: #{multiscale_reaction_forward.1} parent=27 // pred_region
        %s156 = smul.u32 64, %s10
        %p157 = scmp.lt.s32.totalorder %s156, 127
        %s158 = scalar_select %p157, %s156, 127
        %s159 = smul.addr %s158, 8
        %s160 = scalar_lea.vmem %s0, %s159
        %s161 = smul.u32 64, %s10
      $region32: #{multiscale_reaction_forward.1} parent=27 // pred_fallthru
        _
    $region28: #{multiscale_reaction_forward.1} parent=5 // pred_fallthru
      _
    %p162 = scmp.le.s32.totalorder 1, %s10
    %p163 = scmp.lt.s32.totalorder %s10, 3
    %p164 = pnand %p162, %p163
    %p165 = pneg %p164
    // Predicated region
    $region33: #{multiscale_reaction_forward.1} parent=5 // pred_check
      _
    $region34: #{multiscale_reaction_forward.1} parent=5 // pred_check_branch
      %167 = sbr.rel (%p164) target = $region36
    $region35: #{multiscale_reaction_forward.1} parent=5 // pred_region
      %s168 = ssub.s32 %s10, 1
      %s169 = smul.u32 64, %s15
      %p170 = scmp.lt.s32.totalorder %s169, 127
      %s171 = scalar_select %p170, %s169, 127
      %s172 = smul.addr %s171, 8
      %s173 = scalar_lea.vmem %s0, %s172
      %p174 = pneg %p36
      %p175 = pneg %p33
      %p176 = pneg %p57
      %p177 = pneg %p54
      %p178 = pneg %p78
      %p179 = pneg %p75
      %p180 = pneg %p99
      %p181 = pneg %p96
      %p182 = pneg %p125
      %p183 = pneg %p122
      %s184 = smul.u32 64, %s15
      %p185 = scmp.lt.s32.totalorder %s184, 127
      %s186 = scalar_select %p185, %s184, 127
      %s187 = smul.addr %s186, 8
      %s188 = scalar_lea.vmem %s4, %s187
      %s189 = smul.u32 64, %s15
      %p190 = scmp.lt.s32.totalorder %s189, 127
      %s191 = scalar_select %p190, %s189, 127
      %s192 = smul.addr %s191, 8
      %s193 = scalar_lea.vmem %s0, %s192
      %s194 = smul.u32 64, %s15
      %s195 = smul.u32 64, %s15
      %p196 = scmp.lt.s32.totalorder %s195, 127
      %s197 = scalar_select %p196, %s195, 127
      %s198 = smul.addr %s197, 8
      %s199 = scalar_lea.vmem %s4, %s198
      %s200 = smul.u32 64, %s15
      %v201 = vld [vmem:[%s193] sm:$0xff]
      %v202 = vld [vmem:[%s193 + $0x8] sm:$0xff]
      %v203 = vld [vmem:[%s193 + $0x10] sm:$0xff]
      %v204 = vld [vmem:[%s193 + $0x18] sm:$0xff]
      %v205 = vld [vmem:[%s193 + $0x20] sm:$0xff]
      %v206 = vld [vmem:[%s193 + $0x28] sm:$0xff]
      %v207 = vld [vmem:[%s193 + $0x30] sm:$0xff]
      %v208 = vld [vmem:[%s193 + $0x38] sm:$0xff]
      %v209 = vld [vmem:[%s193 + $0x40] sm:$0xff]
      %v210 = vld [vmem:[%s193 + $0x48] sm:$0xff]
      %v211 = vld [vmem:[%s193 + $0x50] sm:$0xff]
      %v212 = vld [vmem:[%s193 + $0x58] sm:$0xff]
      %v213 = vld [vmem:[%s193 + $0x60] sm:$0xff]
      %v214 = vld [vmem:[%s193 + $0x68] sm:$0xff]
      %v215 = vld [vmem:[%s193 + $0x70] sm:$0xff]
      %v216 = vld [vmem:[%s193 + $0x78] sm:$0xff]
      %v217 = vld [vmem:[%s193 + $0x80] sm:$0xff]
      %v218 = vld [vmem:[%s193 + $0x88] sm:$0xff]
      %v219 = vld [vmem:[%s193 + $0x90] sm:$0xff]
      %v220 = vld [vmem:[%s193 + $0x98] sm:$0xff]
      %v221 = vld [vmem:[%s193 + $0xa0] sm:$0xff]
      %v222 = vld [vmem:[%s193 + $0xa8] sm:$0xff]
      %v223 = vld [vmem:[%s193 + $0xb0] sm:$0xff]
      %v224 = vld [vmem:[%s193 + $0xb8] sm:$0xff]
      %v225 = vld [vmem:[%s193 + $0xc0] sm:$0xff]
      %v226 = vld [vmem:[%s193 + $0xc8] sm:$0xff]
      %v227 = vld [vmem:[%s193 + $0xd0] sm:$0xff]
      %v228 = vld [vmem:[%s193 + $0xd8] sm:$0xff]
      %v229 = vld [vmem:[%s193 + $0xe0] sm:$0xff]
      %v230 = vld [vmem:[%s193 + $0xe8] sm:$0xff]
      %v231 = vld [vmem:[%s193 + $0xf0] sm:$0xff]
      %v232 = vld [vmem:[%s193 + $0xf8] sm:$0xff]
      %v233 = vld [vmem:[%s193 + $0x100] sm:$0xff]
      %v234 = vld [vmem:[%s193 + $0x108] sm:$0xff]
      %v235 = vld [vmem:[%s193 + $0x110] sm:$0xff]
      %v236 = vld [vmem:[%s193 + $0x118] sm:$0xff]
      %v237 = vld [vmem:[%s193 + $0x120] sm:$0xff]
      %v238 = vld [vmem:[%s193 + $0x128] sm:$0xff]
      %v239 = vld [vmem:[%s193 + $0x130] sm:$0xff]
      %v240 = vld [vmem:[%s193 + $0x138] sm:$0xff]
      %v241 = vld [vmem:[%s193 + $0x140] sm:$0xff]
      %v242 = vld [vmem:[%s193 + $0x148] sm:$0xff]
      %v243 = vld [vmem:[%s193 + $0x150] sm:$0xff]
      %v244 = vld [vmem:[%s193 + $0x158] sm:$0xff]
      %v245 = vld [vmem:[%s193 + $0x160] sm:$0xff]
      %v246 = vld [vmem:[%s193 + $0x168] sm:$0xff]
      %v247 = vld [vmem:[%s193 + $0x170] sm:$0xff]
      %v248 = vld [vmem:[%s193 + $0x178] sm:$0xff]
      %v249 = vld [vmem:[%s193 + $0x180] sm:$0xff]
      %v250 = vld [vmem:[%s193 + $0x188] sm:$0xff]
      %v251 = vld [vmem:[%s193 + $0x190] sm:$0xff]
      %v252 = vld [vmem:[%s193 + $0x198] sm:$0xff]
      %v253 = vld [vmem:[%s193 + $0x1a0] sm:$0xff]
      %v254 = vld [vmem:[%s193 + $0x1a8] sm:$0xff]
      %v255 = vld [vmem:[%s193 + $0x1b0] sm:$0xff]
      %v256 = vld [vmem:[%s193 + $0x1b8] sm:$0xff]
      %v257 = vld [vmem:[%s193 + $0x1c0] sm:$0xff]
      %v258 = vld [vmem:[%s193 + $0x1c8] sm:$0xff]
      %v259 = vld [vmem:[%s193 + $0x1d0] sm:$0xff]
      %v260 = vld [vmem:[%s193 + $0x1d8] sm:$0xff]
      %v261 = vld [vmem:[%s193 + $0x1e0] sm:$0xff]
      %v262 = vld [vmem:[%s193 + $0x1e8] sm:$0xff]
      %v263 = vld [vmem:[%s193 + $0x1f0] sm:$0xff]
      %v264 = vld [vmem:[%s193 + $0x1f8] sm:$0xff]
      %265 = vxpose.xlu0.b32.start [1/16] %v201, 128
      %266 = vxpose.xlu0.b32.cont [2/16] %v202, 128
      %267 = vxpose.xlu0.b32.cont [3/16] %v203, 128
      %268 = vxpose.xlu0.b32.cont [4/16] %v204, 128
      %269 = vxpose.xlu0.b32.cont [5/16] %v205, 128
      %270 = vxpose.xlu0.b32.cont [6/16] %v206, 128
      %271 = vxpose.xlu0.b32.cont [7/16] %v207, 128
      %272 = vxpose.xlu0.b32.cont [8/16] %v208, 128
      %273 = vxpose.xlu0.b32.cont [9/16] %v209, 128
      %274 = vxpose.xlu0.b32.cont [10/16] %v210, 128
      %275 = vxpose.xlu0.b32.cont [11/16] %v211, 128
      %276 = vxpose.xlu0.b32.cont [12/16] %v212, 128
      %277 = vxpose.xlu0.b32.cont [13/16] %v213, 128
      %278 = vxpose.xlu0.b32.cont [14/16] %v214, 128
      %279 = vxpose.xlu0.b32.cont [15/16] %v215, 128
      %280 = vxpose.xlu0.b32.end [16/16] %v216, 128
      %v281 = vpop.trf.xlu0
      %v282 = vpop.trf.xlu0
      %v283 = vpop.trf.xlu0
      %v284 = vpop.trf.xlu0
      %v285 = vpop.trf.xlu0
      %v286 = vpop.trf.xlu0
      %v287 = vpop.trf.xlu0
      %v288 = vpop.trf.xlu0
      %v289 = vpop.trf.xlu0
      %v290 = vpop.trf.xlu0
      %v291 = vpop.trf.xlu0
      %v292 = vpop.trf.xlu0
      %v293 = vpop.trf.xlu0
      %v294 = vpop.trf.xlu0
      %v295 = vpop.trf.xlu0
      %v296 = vpop.trf.xlu0
      %297 = vxpose.xlu0.b32.start [1/16] %v217, 128
      %298 = vxpose.xlu0.b32.cont [2/16] %v218, 128
      %299 = vxpose.xlu0.b32.cont [3/16] %v219, 128
      %300 = vxpose.xlu0.b32.cont [4/16] %v220, 128
      %301 = vxpose.xlu0.b32.cont [5/16] %v221, 128
      %302 = vxpose.xlu0.b32.cont [6/16] %v222, 128
      %303 = vxpose.xlu0.b32.cont [7/16] %v223, 128
      %304 = vxpose.xlu0.b32.cont [8/16] %v224, 128
      %305 = vxpose.xlu0.b32.cont [9/16] %v225, 128
      %306 = vxpose.xlu0.b32.cont [10/16] %v226, 128
      %307 = vxpose.xlu0.b32.cont [11/16] %v227, 128
      %308 = vxpose.xlu0.b32.cont [12/16] %v228, 128
      %309 = vxpose.xlu0.b32.cont [13/16] %v229, 128
      %310 = vxpose.xlu0.b32.cont [14/16] %v230, 128
      %311 = vxpose.xlu0.b32.cont [15/16] %v231, 128
      %312 = vxpose.xlu0.b32.end [16/16] %v232, 128
      %v313 = vpop.trf.xlu0
      %v314 = vpop.trf.xlu0
      %v315 = vpop.trf.xlu0
      %v316 = vpop.trf.xlu0
      %v317 = vpop.trf.xlu0
      %v318 = vpop.trf.xlu0
      %v319 = vpop.trf.xlu0
      %v320 = vpop.trf.xlu0
      %v321 = vpop.trf.xlu0
      %v322 = vpop.trf.xlu0
      %v323 = vpop.trf.xlu0
      %v324 = vpop.trf.xlu0
      %v325 = vpop.trf.xlu0
      %v326 = vpop.trf.xlu0
      %v327 = vpop.trf.xlu0
      %v328 = vpop.trf.xlu0
      %329 = vxpose.xlu0.b32.start [1/16] %v233, 128
      %330 = vxpose.xlu0.b32.cont [2/16] %v234, 128
      %331 = vxpose.xlu0.b32.cont [3/16] %v235, 128
      %332 = vxpose.xlu0.b32.cont [4/16] %v236, 128
      %333 = vxpose.xlu0.b32.cont [5/16] %v237, 128
      %334 = vxpose.xlu0.b32.cont [6/16] %v238, 128
      %335 = vxpose.xlu0.b32.cont [7/16] %v239, 128
      %336 = vxpose.xlu0.b32.cont [8/16] %v240, 128
      %337 = vxpose.xlu0.b32.cont [9/16] %v241, 128
      %338 = vxpose.xlu0.b32.cont [10/16] %v242, 128
      %339 = vxpose.xlu0.b32.cont [11/16] %v243, 128
      %340 = vxpose.xlu0.b32.cont [12/16] %v244, 128
      %341 = vxpose.xlu0.b32.cont [13/16] %v245, 128
      %342 = vxpose.xlu0.b32.cont [14/16] %v246, 128
      %343 = vxpose.xlu0.b32.cont [15/16] %v247, 128
      %344 = vxpose.xlu0.b32.end [16/16] %v248, 128
      %v345 = vpop.trf.xlu0
      %v346 = vpop.trf.xlu0
      %v347 = vpop.trf.xlu0
      %v348 = vpop.trf.xlu0
      %v349 = vpop.trf.xlu0
      %v350 = vpop.trf.xlu0
      %v351 = vpop.trf.xlu0
      %v352 = vpop.trf.xlu0
      %v353 = vpop.trf.xlu0
      %v354 = vpop.trf.xlu0
      %v355 = vpop.trf.xlu0
      %v356 = vpop.trf.xlu0
      %v357 = vpop.trf.xlu0
      %v358 = vpop.trf.xlu0
      %v359 = vpop.trf.xlu0
      %v360 = vpop.trf.xlu0
      %361 = vxpose.xlu0.b32.start [1/16] %v249, 128
      %362 = vxpose.xlu0.b32.cont [2/16] %v250, 128
      %363 = vxpose.xlu0.b32.cont [3/16] %v251, 128
      %364 = vxpose.xlu0.b32.cont [4/16] %v252, 128
      %365 = vxpose.xlu0.b32.cont [5/16] %v253, 128
      %366 = vxpose.xlu0.b32.cont [6/16] %v254, 128
      %367 = vxpose.xlu0.b32.cont [7/16] %v255, 128
      %368 = vxpose.xlu0.b32.cont [8/16] %v256, 128
      %369 = vxpose.xlu0.b32.cont [9/16] %v257, 128
      %370 = vxpose.xlu0.b32.cont [10/16] %v258, 128
      %371 = vxpose.xlu0.b32.cont [11/16] %v259, 128
      %372 = vxpose.xlu0.b32.cont [12/16] %v260, 128
      %373 = vxpose.xlu0.b32.cont [13/16] %v261, 128
      %374 = vxpose.xlu0.b32.cont [14/16] %v262, 128
      %375 = vxpose.xlu0.b32.cont [15/16] %v263, 128
      %376 = vxpose.xlu0.b32.end [16/16] %v264, 128
      %v377 = vpop.trf.xlu0
      %v378 = vpop.trf.xlu0
      %v379 = vpop.trf.xlu0
      %v380 = vpop.trf.xlu0
      %v381 = vpop.trf.xlu0
      %v382 = vpop.trf.xlu0
      %v383 = vpop.trf.xlu0
      %v384 = vpop.trf.xlu0
      %v385 = vpop.trf.xlu0
      %v386 = vpop.trf.xlu0
      %v387 = vpop.trf.xlu0
      %v388 = vpop.trf.xlu0
      %v389 = vpop.trf.xlu0
      %v390 = vpop.trf.xlu0
      %v391 = vpop.trf.xlu0
      %v392 = vpop.trf.xlu0
      %v393 = vlog2.pop %v281
      %v394 = vmul.f32 %v393, 0.6931472
      %v395 = vlog2.pop %v313
      %v396 = vmul.f32 %v395, 0.6931472
      %v397 = vlog2.pop %v345
      %v398 = vmul.f32 %v397, 0.6931472
      %v399 = vlog2.pop %v377
      %v400 = vmul.f32 %v399, 0.6931472
      %v401 = vld [vmem:[%s1] sm:$0xff]
      %v402 = vld [vmem:[%s1 + $0x8] sm:$0xff]
      %v403 = vld [vmem:[%s1 + $0x10] sm:$0xff]
      %v404 = vld [vmem:[%s1 + $0x18] sm:$0xff]
      %v405 = vld [vmem:[%s2] sm:$0xff]
      %v406 = vld [vmem:[%s2 + $0x8] sm:$0xff]
      %v407 = vld [vmem:[%s2 + $0x10] sm:$0xff]
      %v408 = vld [vmem:[%s2 + $0x18] sm:$0xff]
      %410 = vset.pattern.permute.xlu0 0
      %411 = vperm.xlu0 %410, %v405
      %v412 = vpop.permute.xlu0 %411
      %415 = vset.pattern.permute.xlu0 0
      %416 = vperm.xlu0 %415, %v406
      %v417 = vpop.permute.xlu0 %416
      %420 = vset.pattern.permute.xlu0 0
      %421 = vperm.xlu0 %420, %v407
      %v422 = vpop.permute.xlu0 %421
      %425 = vset.pattern.permute.xlu0 0
      %426 = vperm.xlu0 %425, %v408
      %v427 = vpop.permute.xlu0 %426
      %vm429 = vcmask 64512
      %v431 = vsel %vm429, %v401, 0
      %v434 = vsel %vm429, %v402, 0
      %v437 = vsel %vm429, %v403, 0
      %v440 = vsel %vm429, %v404, 0
      %442 = vmatprep.subr.mxu0 %v396
      %443 = vmatpush1.msra.mxu0 %v394
      %444 = vmatprep.subr.mxu0 0.0
      %445 = vmatpush1.msra.mxu0 0.0
      %446 = vmatprep.subr.mxu0 0.0
      %447 = vmatpush1.msra.mxu0 0.0
      %448 = vmatprep.subr.mxu0 0.0
      %449 = vmatpush1.msra.mxu0 0.0
      %450 = vmatprep.subr.mxu0 0.0
      %451 = vmatpush1.msra.mxu0 0.0
      %452 = vmatprep.subr.mxu0 0.0
      %453 = vmatpush1.msra.mxu0 0.0
      %454 = vmatprep.subr.mxu0 0.0
      %455 = vmatpush1.msra.mxu0 0.0
      %456 = vmatprep.subr.mxu0 0.0
      %457 = vmatpush1.msra.mxu0 0.0
      %458 = vmatprep.subr.mxu0 0.0
      %459 = vmatpush1.msra.mxu0 0.0
      %460 = vmatprep.subr.mxu0 0.0
      %461 = vmatpush1.msra.mxu0 0.0
      %462 = vmatprep.subr.mxu0 0.0
      %463 = vmatpush1.msra.mxu0 0.0
      %464 = vmatprep.subr.mxu0 0.0
      %465 = vmatpush1.msra.mxu0 0.0
      %466 = vmatprep.subr.mxu0 0.0
      %467 = vmatpush1.msra.mxu0 0.0
      %468 = vmatprep.subr.mxu0 0.0
      %469 = vmatpush1.msra.mxu0 0.0
      %470 = vmatprep.subr.mxu0 0.0
      %471 = vmatpush1.msra.mxu0 0.0
      %472 = vmatprep.subr.mxu0 0.0
      %473 = vmatpush1.msra.mxu0 0.0
      %474 = vmatprep.subr.mxu0 0.0
      %475 = vmatpush1.msra.mxu0 0.0
      %476 = vmatprep.subr.mxu0 0.0
      %477 = vmatpush1.msra.mxu0 0.0
      %478 = vmatprep.subr.mxu0 0.0
      %479 = vmatpush1.msra.mxu0 0.0
      %480 = vmatprep.subr.mxu0 0.0
      %481 = vmatpush1.msra.mxu0 0.0
      %482 = vmatprep.subr.mxu0 0.0
      %483 = vmatpush1.msra.mxu0 0.0
      %484 = vmatprep.subr.mxu0 0.0
      %485 = vmatpush1.msra.mxu0 0.0
      %486 = vmatprep.subr.mxu0 0.0
      %487 = vmatpush1.msra.mxu0 0.0
      %488 = vmatprep.subr.mxu0 0.0
      %489 = vmatpush1.msra.mxu0 0.0
      %490 = vmatprep.subr.mxu0 0.0
      %491 = vmatpush1.msra.mxu0 0.0
      %492 = vmatprep.subr.mxu0 0.0
      %493 = vmatpush1.msra.mxu0 0.0
      %494 = vmatprep.subr.mxu0 0.0
      %495 = vmatpush1.msra.mxu0 0.0
      %496 = vmatprep.subr.mxu0 0.0
      %497 = vmatpush1.msra.mxu0 0.0
      %498 = vmatprep.subr.mxu0 0.0
      %499 = vmatpush1.msra.mxu0 0.0
      %500 = vmatprep.subr.mxu0 0.0
      %501 = vmatpush1.msra.mxu0 0.0
      %502 = vmatprep.subr.mxu0 0.0
      %503 = vmatpush1.msra.mxu0 0.0
      %504 = vmatprep.subr.mxu0 0.0
      %505 = vmatpush1.msra.mxu0 0.0
      %506 = vmatprep.mubr.f32.mxu0 0.0
      %507 = vmatmul.mubr.f32.gmra.mrb[0].mxu0 %v431
      %v508 = vpop.f32.mrb[0].mxu0
      %v509 = vadd.f32 %v412, %v508
      %v510 = vpop.f32.mrb[0].mxu0
      %v511 = vadd.f32 %v412, %v510
      %512 = vmatprep.mubr.f32.mxu0 0.0
      %513 = vmatmul.mubr.f32.gmra.mrb[0].mxu0 %v434
      %v514 = vpop.f32.mrb[0].mxu0
      %v515 = vadd.f32 %v417, %v514
      %v516 = vpop.f32.mrb[0].mxu0
      %v517 = vadd.f32 %v417, %v516
      %518 = vmatprep.mubr.f32.mxu0 0.0
      %519 = vmatmul.mubr.f32.gmra.mrb[0].mxu0 %v437
      %v520 = vpop.f32.mrb[0].mxu0
      %v521 = vadd.f32 %v422, %v520
      %v522 = vpop.f32.mrb[0].mxu0
      %v523 = vadd.f32 %v422, %v522
      %524 = vmatprep.mubr.f32.mxu0 0.0
      %525 = vmatmul.mubr.f32.gmra.mrb[0].mxu0 %v440
      %v526 = vpop.f32.mrb[0].mxu0
      %v527 = vadd.f32 %v427, %v526
      %v528 = vpop.f32.mrb[0].mxu0
      %v529 = vadd.f32 %v427, %v528
      %530 = vdwg.mxu0
      %531 = vmatprep.subr.mxu0 %v400
      %532 = vmatpush1.msra.mxu0 %v398
      %533 = vmatprep.subr.mxu0 0.0
      %534 = vmatpush1.msra.mxu0 0.0
      %535 = vmatprep.subr.mxu0 0.0
      %536 = vmatpush1.msra.mxu0 0.0
      %537 = vmatprep.subr.mxu0 0.0
      %538 = vmatpush1.msra.mxu0 0.0
      %539 = vmatprep.subr.mxu0 0.0
      %540 = vmatpush1.msra.mxu0 0.0
      %541 = vmatprep.subr.mxu0 0.0
      %542 = vmatpush1.msra.mxu0 0.0
      %543 = vmatprep.subr.mxu0 0.0
      %544 = vmatpush1.msra.mxu0 0.0
      %545 = vmatprep.subr.mxu0 0.0
      %546 = vmatpush1.msra.mxu0 0.0
      %547 = vmatprep.subr.mxu0 0.0
      %548 = vmatpush1.msra.mxu0 0.0
      %549 = vmatprep.subr.mxu0 0.0
      %550 = vmatpush1.msra.mxu0 0.0
      %551 = vmatprep.subr.mxu0 0.0
      %552 = vmatpush1.msra.mxu0 0.0
      %553 = vmatprep.subr.mxu0 0.0
      %554 = vmatpush1.msra.mxu0 0.0
      %555 = vmatprep.subr.mxu0 0.0
      %556 = vmatpush1.msra.mxu0 0.0
      %557 = vmatprep.subr.mxu0 0.0
      %558 = vmatpush1.msra.mxu0 0.0
      %559 = vmatprep.subr.mxu0 0.0
      %560 = vmatpush1.msra.mxu0 0.0
      %561 = vmatprep.subr.mxu0 0.0
      %562 = vmatpush1.msra.mxu0 0.0
      %563 = vmatprep.subr.mxu0 0.0
      %564 = vmatpush1.msra.mxu0 0.0
      %565 = vmatprep.subr.mxu0 0.0
      %566 = vmatpush1.msra.mxu0 0.0
      %567 = vmatprep.subr.mxu0 0.0
      %568 = vmatpush1.msra.mxu0 0.0
      %569 = vmatprep.subr.mxu0 0.0
      %570 = vmatpush1.msra.mxu0 0.0
      %571 = vmatprep.subr.mxu0 0.0
      %572 = vmatpush1.msra.mxu0 0.0
      %573 = vmatprep.subr.mxu0 0.0
      %574 = vmatpush1.msra.mxu0 0.0
      %575 = vmatprep.subr.mxu0 0.0
      %576 = vmatpush1.msra.mxu0 0.0
      %577 = vmatprep.subr.mxu0 0.0
      %578 = vmatpush1.msra.mxu0 0.0
      %579 = vmatprep.subr.mxu0 0.0
      %580 = vmatpush1.msra.mxu0 0.0
      %581 = vmatprep.subr.mxu0 0.0
      %582 = vmatpush1.msra.mxu0 0.0
      %583 = vmatprep.subr.mxu0 0.0
      %584 = vmatpush1.msra.mxu0 0.0
      %585 = vmatprep.subr.mxu0 0.0
      %586 = vmatpush1.msra.mxu0 0.0
      %587 = vmatprep.subr.mxu0 0.0
      %588 = vmatpush1.msra.mxu0 0.0
      %589 = vmatprep.subr.mxu0 0.0
      %590 = vmatpush1.msra.mxu0 0.0
      %591 = vmatprep.subr.mxu0 0.0
      %592 = vmatpush1.msra.mxu0 0.0
      %593 = vmatprep.subr.mxu0 0.0
      %594 = vmatpush1.msra.mxu0 0.0
      %595 = vmatprep.mubr.f32.mxu0 0.0
      %596 = vmatmul.mubr.f32.gmra.mrb[0].mxu0 %v431
      %v597 = vpop.f32.mrb[0].mxu0
      %v598 = vadd.f32 %v412, %v597
      %v599 = vpop.f32.mrb[0].mxu0
      %v600 = vadd.f32 %v412, %v599
      %601 = vmatprep.mubr.f32.mxu0 0.0
      %602 = vmatmul.mubr.f32.gmra.mrb[0].mxu0 %v434
      %v603 = vpop.f32.mrb[0].mxu0
      %v604 = vadd.f32 %v417, %v603
      %v605 = vpop.f32.mrb[0].mxu0
      %v606 = vadd.f32 %v417, %v605
      %607 = vmatprep.mubr.f32.mxu0 0.0
      %608 = vmatmul.mubr.f32.gmra.mrb[0].mxu0 %v437
      %v609 = vpop.f32.mrb[0].mxu0
      %v610 = vadd.f32 %v422, %v609
      %v611 = vpop.f32.mrb[0].mxu0
      %v612 = vadd.f32 %v422, %v611
      %613 = vmatprep.mubr.f32.mxu0 0.0
      %614 = vmatmul.mubr.f32.gmra.mrb[0].mxu0 %v440
      %v615 = vpop.f32.mrb[0].mxu0
      %v616 = vadd.f32 %v427, %v615
      %v617 = vpop.f32.mrb[0].mxu0
      %v618 = vadd.f32 %v427, %v617
      %619 = vdwg.mxu0
      %v620 = vmul.f32 %v509, 1.442695
      %v621 = vpow.pop %v620
      %v622 = vmul.f32 %v511, 1.442695
      %v623 = vpow.pop %v622
      %v624 = vmul.f32 %v598, 1.442695
      %v625 = vpow.pop %v624
      %v626 = vmul.f32 %v600, 1.442695
      %v627 = vpow.pop %v626
      %v628 = vmul.f32 %v515, 1.442695
      %v629 = vpow.pop %v628
      %v630 = vmul.f32 %v517, 1.442695
      %v631 = vpow.pop %v630
      %v632 = vmul.f32 %v604, 1.442695
      %v633 = vpow.pop %v632
      %v634 = vmul.f32 %v606, 1.442695
      %v635 = vpow.pop %v634
      %v636 = vmul.f32 %v521, 1.442695
      %v637 = vpow.pop %v636
      %v638 = vmul.f32 %v523, 1.442695
      %v639 = vpow.pop %v638
      %v640 = vmul.f32 %v610, 1.442695
      %v641 = vpow.pop %v640
      %v642 = vmul.f32 %v612, 1.442695
      %v643 = vpow.pop %v642
      %v644 = vmul.f32 %v527, 1.442695
      %v645 = vpow.pop %v644
      %v646 = vmul.f32 %v529, 1.442695
      %v647 = vpow.pop %v646
      %v648 = vmul.f32 %v616, 1.442695
      %v649 = vpow.pop %v648
      %v650 = vmul.f32 %v618, 1.442695
      %v651 = vpow.pop %v650
      %v652 = vld [vmem:[%s3] sm:$0xff]
      %vm653 = vcmask 261120
      %v655 = vsel %vm653, %v652, 0
      %657 = vmatprep.subr.mxu0 %v623
      %658 = vmatpush1.msra.mxu0 %v621
      %659 = vmatprep.subr.mxu0 %v631
      %660 = vmatpush1.msra.mxu0 %v629
      %661 = vmatprep.subr.mxu0 %v639
      %662 = vmatpush1.msra.mxu0 %v637
      %663 = vmatprep.subr.mxu0 %v647
      %664 = vmatpush1.msra.mxu0 %v645
      %665 = vmatprep.subr.mxu0 0.0
      %666 = vmatpush1.msra.mxu0 0.0
      %667 = vmatprep.subr.mxu0 0.0
      %668 = vmatpush1.msra.mxu0 0.0
      %669 = vmatprep.subr.mxu0 0.0
      %670 = vmatpush1.msra.mxu0 0.0
      %671 = vmatprep.subr.mxu0 0.0
      %672 = vmatpush1.msra.mxu0 0.0
      %673 = vmatprep.subr.mxu0 0.0
      %674 = vmatpush1.msra.mxu0 0.0
      %675 = vmatprep.subr.mxu0 0.0
      %676 = vmatpush1.msra.mxu0 0.0
      %677 = vmatprep.subr.mxu0 0.0
      %678 = vmatpush1.msra.mxu0 0.0
      %679 = vmatprep.subr.mxu0 0.0
      %680 = vmatpush1.msra.mxu0 0.0
      %681 = vmatprep.subr.mxu0 0.0
      %682 = vmatpush1.msra.mxu0 0.0
      %683 = vmatprep.subr.mxu0 0.0
      %684 = vmatpush1.msra.mxu0 0.0
      %685 = vmatprep.subr.mxu0 0.0
      %686 = vmatpush1.msra.mxu0 0.0
      %687 = vmatprep.subr.mxu0 0.0
      %688 = vmatpush1.msra.mxu0 0.0
      %689 = vmatprep.subr.mxu0 0.0
      %690 = vmatpush1.msra.mxu0 0.0
      %691 = vmatprep.subr.mxu0 0.0
      %692 = vmatpush1.msra.mxu0 0.0
      %693 = vmatprep.subr.mxu0 0.0
      %694 = vmatpush1.msra.mxu0 0.0
      %695 = vmatprep.subr.mxu0 0.0
      %696 = vmatpush1.msra.mxu0 0.0
      %697 = vmatprep.subr.mxu0 0.0
      %698 = vmatpush1.msra.mxu0 0.0
      %699 = vmatprep.subr.mxu0 0.0
      %700 = vmatpush1.msra.mxu0 0.0
      %701 = vmatprep.subr.mxu0 0.0
      %702 = vmatpush1.msra.mxu0 0.0
      %703 = vmatprep.subr.mxu0 0.0
      %704 = vmatpush1.msra.mxu0 0.0
      %705 = vmatprep.subr.mxu0 0.0
      %706 = vmatpush1.msra.mxu0 0.0
      %707 = vmatprep.subr.mxu0 0.0
      %708 = vmatpush1.msra.mxu0 0.0
      %709 = vmatprep.subr.mxu0 0.0
      %710 = vmatpush1.msra.mxu0 0.0
      %711 = vmatprep.subr.mxu0 0.0
      %712 = vmatpush1.msra.mxu0 0.0
      %713 = vmatprep.subr.mxu0 0.0
      %714 = vmatpush1.msra.mxu0 0.0
      %715 = vmatprep.subr.mxu0 0.0
      %716 = vmatpush1.msra.mxu0 0.0
      %717 = vmatprep.subr.mxu0 0.0
      %718 = vmatpush1.msra.mxu0 0.0
      %719 = vmatprep.subr.mxu0 0.0
      %720 = vmatpush1.msra.mxu0 0.0
      %721 = vmatprep.mubr.f32.mxu0 0.0
      %722 = vmatmul.mubr.f32.gmra.mrb[0].mxu0 %v655
      %v723 = vpop.f32.mrb[0].mxu0
      %v724 = vadd.f32 0.0, %v723
      %v725 = vpop.f32.mrb[0].mxu0
      %v726 = vadd.f32 0.0, %v725
      %727 = vdwg.mxu0
      %728 = vmatprep.subr.mxu0 %v627
      %729 = vmatpush1.msra.mxu0 %v625
      %730 = vmatprep.subr.mxu0 %v635
      %731 = vmatpush1.msra.mxu0 %v633
      %732 = vmatprep.subr.mxu0 %v643
      %733 = vmatpush1.msra.mxu0 %v641
      %734 = vmatprep.subr.mxu0 %v651
      %735 = vmatpush1.msra.mxu0 %v649
      %736 = vmatprep.subr.mxu0 0.0
      %737 = vmatpush1.msra.mxu0 0.0
      %738 = vmatprep.subr.mxu0 0.0
      %739 = vmatpush1.msra.mxu0 0.0
      %740 = vmatprep.subr.mxu0 0.0
      %741 = vmatpush1.msra.mxu0 0.0
      %742 = vmatprep.subr.mxu0 0.0
      %743 = vmatpush1.msra.mxu0 0.0
      %744 = vmatprep.subr.mxu0 0.0
      %745 = vmatpush1.msra.mxu0 0.0
      %746 = vmatprep.subr.mxu0 0.0
      %747 = vmatpush1.msra.mxu0 0.0
      %748 = vmatprep.subr.mxu0 0.0
      %749 = vmatpush1.msra.mxu0 0.0
      %750 = vmatprep.subr.mxu0 0.0
      %751 = vmatpush1.msra.mxu0 0.0
      %752 = vmatprep.subr.mxu0 0.0
      %753 = vmatpush1.msra.mxu0 0.0
      %754 = vmatprep.subr.mxu0 0.0
      %755 = vmatpush1.msra.mxu0 0.0
      %756 = vmatprep.subr.mxu0 0.0
      %757 = vmatpush1.msra.mxu0 0.0
      %758 = vmatprep.subr.mxu0 0.0
      %759 = vmatpush1.msra.mxu0 0.0
      %760 = vmatprep.subr.mxu0 0.0
      %761 = vmatpush1.msra.mxu0 0.0
      %762 = vmatprep.subr.mxu0 0.0
      %763 = vmatpush1.msra.mxu0 0.0
      %764 = vmatprep.subr.mxu0 0.0
      %765 = vmatpush1.msra.mxu0 0.0
      %766 = vmatprep.subr.mxu0 0.0
      %767 = vmatpush1.msra.mxu0 0.0
      %768 = vmatprep.subr.mxu0 0.0
      %769 = vmatpush1.msra.mxu0 0.0
      %770 = vmatprep.subr.mxu0 0.0
      %771 = vmatpush1.msra.mxu0 0.0
      %772 = vmatprep.subr.mxu0 0.0
      %773 = vmatpush1.msra.mxu0 0.0
      %774 = vmatprep.subr.mxu0 0.0
      %775 = vmatpush1.msra.mxu0 0.0
      %776 = vmatprep.subr.mxu0 0.0
      %777 = vmatpush1.msra.mxu0 0.0
      %778 = vmatprep.subr.mxu0 0.0
      %779 = vmatpush1.msra.mxu0 0.0
      %780 = vmatprep.subr.mxu0 0.0
      %781 = vmatpush1.msra.mxu0 0.0
      %782 = vmatprep.subr.mxu0 0.0
      %783 = vmatpush1.msra.mxu0 0.0
      %784 = vmatprep.subr.mxu0 0.0
      %785 = vmatpush1.msra.mxu0 0.0
      %786 = vmatprep.subr.mxu0 0.0
      %787 = vmatpush1.msra.mxu0 0.0
      %788 = vmatprep.subr.mxu0 0.0
      %789 = vmatpush1.msra.mxu0 0.0
      %790 = vmatprep.subr.mxu0 0.0
      %791 = vmatpush1.msra.mxu0 0.0
      %792 = vmatprep.mubr.f32.mxu0 0.0
      %793 = vmatmul.mubr.f32.gmra.mrb[0].mxu0 %v655
      %v794 = vpop.f32.mrb[0].mxu0
      %v795 = vadd.f32 0.0, %v794
      %v796 = vpop.f32.mrb[0].mxu0
      %v797 = vadd.f32 0.0, %v796
      %798 = vdwg.mxu0
      %799 = vxpose.xlu0.b32.start [1/16] %v724, 128
      %800 = vxpose.xlu0.b32.cont [2/16] 0.0, 128
      %801 = vxpose.xlu0.b32.cont [3/16] 0.0, 128
      %802 = vxpose.xlu0.b32.cont [4/16] 0.0, 128
      %803 = vxpose.xlu0.b32.cont [5/16] 0.0, 128
      %804 = vxpose.xlu0.b32.cont [6/16] 0.0, 128
      %805 = vxpose.xlu0.b32.cont [7/16] 0.0, 128
      %806 = vxpose.xlu0.b32.cont [8/16] 0.0, 128
      %807 = vxpose.xlu0.b32.cont [9/16] 0.0, 128
      %808 = vxpose.xlu0.b32.cont [10/16] 0.0, 128
      %809 = vxpose.xlu0.b32.cont [11/16] 0.0, 128
      %810 = vxpose.xlu0.b32.cont [12/16] 0.0, 128
      %811 = vxpose.xlu0.b32.cont [13/16] 0.0, 128
      %812 = vxpose.xlu0.b32.cont [14/16] 0.0, 128
      %813 = vxpose.xlu0.b32.cont [15/16] 0.0, 128
      %814 = vxpose.xlu0.b32.end [16/16] 0.0, 128
      %v815 = vpop.trf.xlu0
      %v816 = vpop.trf.xlu0
      %v817 = vpop.trf.xlu0
      %v818 = vpop.trf.xlu0
      %v819 = vpop.trf.xlu0
      %v820 = vpop.trf.xlu0
      %v821 = vpop.trf.xlu0
      %v822 = vpop.trf.xlu0
      %v823 = vpop.trf.xlu0
      %v824 = vpop.trf.xlu0
      %v825 = vpop.trf.xlu0
      %v826 = vpop.trf.xlu0
      %v827 = vpop.trf.xlu0
      %v828 = vpop.trf.xlu0
      %v829 = vpop.trf.xlu0
      %v830 = vpop.trf.xlu0
      %831 = vxpose.xlu0.b32.start [1/16] %v726, 128
      %832 = vxpose.xlu0.b32.cont [2/16] 0.0, 128
      %833 = vxpose.xlu0.b32.cont [3/16] 0.0, 128
      %834 = vxpose.xlu0.b32.cont [4/16] 0.0, 128
      %835 = vxpose.xlu0.b32.cont [5/16] 0.0, 128
      %836 = vxpose.xlu0.b32.cont [6/16] 0.0, 128
      %837 = vxpose.xlu0.b32.cont [7/16] 0.0, 128
      %838 = vxpose.xlu0.b32.cont [8/16] 0.0, 128
      %839 = vxpose.xlu0.b32.cont [9/16] 0.0, 128
      %840 = vxpose.xlu0.b32.cont [10/16] 0.0, 128
      %841 = vxpose.xlu0.b32.cont [11/16] 0.0, 128
      %842 = vxpose.xlu0.b32.cont [12/16] 0.0, 128
      %843 = vxpose.xlu0.b32.cont [13/16] 0.0, 128
      %844 = vxpose.xlu0.b32.cont [14/16] 0.0, 128
      %845 = vxpose.xlu0.b32.cont [15/16] 0.0, 128
      %846 = vxpose.xlu0.b32.end [16/16] 0.0, 128
      %v847 = vpop.trf.xlu0
      %v848 = vpop.trf.xlu0
      %v849 = vpop.trf.xlu0
      %v850 = vpop.trf.xlu0
      %v851 = vpop.trf.xlu0
      %v852 = vpop.trf.xlu0
      %v853 = vpop.trf.xlu0
      %v854 = vpop.trf.xlu0
      %v855 = vpop.trf.xlu0
      %v856 = vpop.trf.xlu0
      %v857 = vpop.trf.xlu0
      %v858 = vpop.trf.xlu0
      %v859 = vpop.trf.xlu0
      %v860 = vpop.trf.xlu0
      %v861 = vpop.trf.xlu0
      %v862 = vpop.trf.xlu0
      %863 = vxpose.xlu0.b32.start [1/16] %v795, 128
      %864 = vxpose.xlu0.b32.cont [2/16] 0.0, 128
      %865 = vxpose.xlu0.b32.cont [3/16] 0.0, 128
      %866 = vxpose.xlu0.b32.cont [4/16] 0.0, 128
      %867 = vxpose.xlu0.b32.cont [5/16] 0.0, 128
      %868 = vxpose.xlu0.b32.cont [6/16] 0.0, 128
      %869 = vxpose.xlu0.b32.cont [7/16] 0.0, 128
      %870 = vxpose.xlu0.b32.cont [8/16] 0.0, 128
      %871 = vxpose.xlu0.b32.cont [9/16] 0.0, 128
      %872 = vxpose.xlu0.b32.cont [10/16] 0.0, 128
      %873 = vxpose.xlu0.b32.cont [11/16] 0.0, 128
      %874 = vxpose.xlu0.b32.cont [12/16] 0.0, 128
      %875 = vxpose.xlu0.b32.cont [13/16] 0.0, 128
      %876 = vxpose.xlu0.b32.cont [14/16] 0.0, 128
      %877 = vxpose.xlu0.b32.cont [15/16] 0.0, 128
      %878 = vxpose.xlu0.b32.end [16/16] 0.0, 128
      %v879 = vpop.trf.xlu0
      %v880 = vpop.trf.xlu0
      %v881 = vpop.trf.xlu0
      %v882 = vpop.trf.xlu0
      %v883 = vpop.trf.xlu0
      %v884 = vpop.trf.xlu0
      %v885 = vpop.trf.xlu0
      %v886 = vpop.trf.xlu0
      %v887 = vpop.trf.xlu0
      %v888 = vpop.trf.xlu0
      %v889 = vpop.trf.xlu0
      %v890 = vpop.trf.xlu0
      %v891 = vpop.trf.xlu0
      %v892 = vpop.trf.xlu0
      %v893 = vpop.trf.xlu0
      %v894 = vpop.trf.xlu0
      %895 = vxpose.xlu0.b32.start [1/16] %v797, 128
      %896 = vxpose.xlu0.b32.cont [2/16] 0.0, 128
      %897 = vxpose.xlu0.b32.cont [3/16] 0.0, 128
      %898 = vxpose.xlu0.b32.cont [4/16] 0.0, 128
      %899 = vxpose.xlu0.b32.cont [5/16] 0.0, 128
      %900 = vxpose.xlu0.b32.cont [6/16] 0.0, 128
      %901 = vxpose.xlu0.b32.cont [7/16] 0.0, 128
      %902 = vxpose.xlu0.b32.cont [8/16] 0.0, 128
      %903 = vxpose.xlu0.b32.cont [9/16] 0.0, 128
      %904 = vxpose.xlu0.b32.cont [10/16] 0.0, 128
      %905 = vxpose.xlu0.b32.cont [11/16] 0.0, 128
      %906 = vxpose.xlu0.b32.cont [12/16] 0.0, 128
      %907 = vxpose.xlu0.b32.cont [13/16] 0.0, 128
      %908 = vxpose.xlu0.b32.cont [14/16] 0.0, 128
      %909 = vxpose.xlu0.b32.cont [15/16] 0.0, 128
      %910 = vxpose.xlu0.b32.end [16/16] 0.0, 128
      %v911 = vpop.trf.xlu0
      %v912 = vpop.trf.xlu0
      %v913 = vpop.trf.xlu0
      %v914 = vpop.trf.xlu0
      %v915 = vpop.trf.xlu0
      %v916 = vpop.trf.xlu0
      %v917 = vpop.trf.xlu0
      %v918 = vpop.trf.xlu0
      %v919 = vpop.trf.xlu0
      %v920 = vpop.trf.xlu0
      %v921 = vpop.trf.xlu0
      %v922 = vpop.trf.xlu0
      %v923 = vpop.trf.xlu0
      %v924 = vpop.trf.xlu0
      %v925 = vpop.trf.xlu0
      %v926 = vpop.trf.xlu0
      %927 = vst.msk [vmem:[%s199] sm:$0xff] %vm429, %v815
      %928 = vst.msk [vmem:[%s199 + $0x8] sm:$0xff] %vm429, %v816
      %929 = vst.msk [vmem:[%s199 + $0x10] sm:$0xff] %vm429, %v817
      %930 = vst.msk [vmem:[%s199 + $0x18] sm:$0xff] %vm429, %v818
      %931 = vst.msk [vmem:[%s199 + $0x20] sm:$0xff] %vm429, %v819
      %932 = vst.msk [vmem:[%s199 + $0x28] sm:$0xff] %vm429, %v820
      %933 = vst.msk [vmem:[%s199 + $0x30] sm:$0xff] %vm429, %v821
      %934 = vst.msk [vmem:[%s199 + $0x38] sm:$0xff] %vm429, %v822
      %935 = vst.msk [vmem:[%s199 + $0x40] sm:$0xff] %vm429, %v823
      %936 = vst.msk [vmem:[%s199 + $0x48] sm:$0xff] %vm429, %v824
      %937 = vst.msk [vmem:[%s199 + $0x50] sm:$0xff] %vm429, %v825
      %938 = vst.msk [vmem:[%s199 + $0x58] sm:$0xff] %vm429, %v826
      %939 = vst.msk [vmem:[%s199 + $0x60] sm:$0xff] %vm429, %v827
      %940 = vst.msk [vmem:[%s199 + $0x68] sm:$0xff] %vm429, %v828
      %941 = vst.msk [vmem:[%s199 + $0x70] sm:$0xff] %vm429, %v829
      %942 = vst.msk [vmem:[%s199 + $0x78] sm:$0xff] %vm429, %v830
      %943 = vst.msk [vmem:[%s199 + $0x80] sm:$0xff] %vm429, %v847
      %944 = vst.msk [vmem:[%s199 + $0x88] sm:$0xff] %vm429, %v848
      %945 = vst.msk [vmem:[%s199 + $0x90] sm:$0xff] %vm429, %v849
      %946 = vst.msk [vmem:[%s199 + $0x98] sm:$0xff] %vm429, %v850
      %947 = vst.msk [vmem:[%s199 + $0xa0] sm:$0xff] %vm429, %v851
      %948 = vst.msk [vmem:[%s199 + $0xa8] sm:$0xff] %vm429, %v852
      %949 = vst.msk [vmem:[%s199 + $0xb0] sm:$0xff] %vm429, %v853
      %950 = vst.msk [vmem:[%s199 + $0xb8] sm:$0xff] %vm429, %v854
      %951 = vst.msk [vmem:[%s199 + $0xc0] sm:$0xff] %vm429, %v855
      %952 = vst.msk [vmem:[%s199 + $0xc8] sm:$0xff] %vm429, %v856
      %953 = vst.msk [vmem:[%s199 + $0xd0] sm:$0xff] %vm429, %v857
      %954 = vst.msk [vmem:[%s199 + $0xd8] sm:$0xff] %vm429, %v858
      %955 = vst.msk [vmem:[%s199 + $0xe0] sm:$0xff] %vm429, %v859
      %956 = vst.msk [vmem:[%s199 + $0xe8] sm:$0xff] %vm429, %v860
      %957 = vst.msk [vmem:[%s199 + $0xf0] sm:$0xff] %vm429, %v861
      %958 = vst.msk [vmem:[%s199 + $0xf8] sm:$0xff] %vm429, %v862
      %959 = vst.msk [vmem:[%s199 + $0x100] sm:$0xff] %vm429, %v879
      %960 = vst.msk [vmem:[%s199 + $0x108] sm:$0xff] %vm429, %v880
      %961 = vst.msk [vmem:[%s199 + $0x110] sm:$0xff] %vm429, %v881
      %962 = vst.msk [vmem:[%s199 + $0x118] sm:$0xff] %vm429, %v882
      %963 = vst.msk [vmem:[%s199 + $0x120] sm:$0xff] %vm429, %v883
      %964 = vst.msk [vmem:[%s199 + $0x128] sm:$0xff] %vm429, %v884
      %965 = vst.msk [vmem:[%s199 + $0x130] sm:$0xff] %vm429, %v885
      %966 = vst.msk [vmem:[%s199 + $0x138] sm:$0xff] %vm429, %v886
      %967 = vst.msk [vmem:[%s199 + $0x140] sm:$0xff] %vm429, %v887
      %968 = vst.msk [vmem:[%s199 + $0x148] sm:$0xff] %vm429, %v888
      %969 = vst.msk [vmem:[%s199 + $0x150] sm:$0xff] %vm429, %v889
      %970 = vst.msk [vmem:[%s199 + $0x158] sm:$0xff] %vm429, %v890
      %971 = vst.msk [vmem:[%s199 + $0x160] sm:$0xff] %vm429, %v891
      %972 = vst.msk [vmem:[%s199 + $0x168] sm:$0xff] %vm429, %v892
      %973 = vst.msk [vmem:[%s199 + $0x170] sm:$0xff] %vm429, %v893
      %974 = vst.msk [vmem:[%s199 + $0x178] sm:$0xff] %vm429, %v894
      %975 = vst.msk [vmem:[%s199 + $0x180] sm:$0xff] %vm429, %v911
      %976 = vst.msk [vmem:[%s199 + $0x188] sm:$0xff] %vm429, %v912
      %977 = vst.msk [vmem:[%s199 + $0x190] sm:$0xff] %vm429, %v913
      %978 = vst.msk [vmem:[%s199 + $0x198] sm:$0xff] %vm429, %v914
      %979 = vst.msk [vmem:[%s199 + $0x1a0] sm:$0xff] %vm429, %v915
      %980 = vst.msk [vmem:[%s199 + $0x1a8] sm:$0xff] %vm429, %v916
      %981 = vst.msk [vmem:[%s199 + $0x1b0] sm:$0xff] %vm429, %v917
      %982 = vst.msk [vmem:[%s199 + $0x1b8] sm:$0xff] %vm429, %v918
      %983 = vst.msk [vmem:[%s199 + $0x1c0] sm:$0xff] %vm429, %v919
      %984 = vst.msk [vmem:[%s199 + $0x1c8] sm:$0xff] %vm429, %v920
      %985 = vst.msk [vmem:[%s199 + $0x1d0] sm:$0xff] %vm429, %v921
      %986 = vst.msk [vmem:[%s199 + $0x1d8] sm:$0xff] %vm429, %v922
      %987 = vst.msk [vmem:[%s199 + $0x1e0] sm:$0xff] %vm429, %v923
      %988 = vst.msk [vmem:[%s199 + $0x1e8] sm:$0xff] %vm429, %v924
      %989 = vst.msk [vmem:[%s199 + $0x1f0] sm:$0xff] %vm429, %v925
      %990 = vst.msk [vmem:[%s199 + $0x1f8] sm:$0xff] %vm429, %v926
      %s991 = smul.u32 64, %s15
      %p992 = scmp.lt.s32.totalorder %s991, 127
      %s993 = scalar_select %p992, %s991, 127
      %s994 = smul.addr %s993, 8
      %s995 = scalar_lea.vmem %s4, %s994
      // Predicated region
      $region37: #{multiscale_reaction_forward.1} parent=35 // pred_check
        %p996 = pneg %p122
      $region38: #{multiscale_reaction_forward.1} parent=35 // pred_check_branch
        %998 = sbr.rel (%p996) target = $region40
      $region39: #{multiscale_reaction_forward.1} parent=35 // pred_region
        %s999 = smul.u32 64, %s15
      $region40: #{multiscale_reaction_forward.1} parent=35 // pred_fallthru
        _
    $region36: #{multiscale_reaction_forward.1} parent=5 // pred_fallthru
      _
    %p1000 = scmp.le.s32.totalorder 2, %s10
    // Predicated region
    $region41: #{multiscale_reaction_forward.1} parent=5 // pred_check
      %p1001 = pneg %p1000
    $region42: #{multiscale_reaction_forward.1} parent=5 // pred_check_branch
      %1003 = sbr.rel (%p1001) target = $region44
    $region43: #{multiscale_reaction_forward.1} parent=5 // pred_region
      %s1004 = ssub.s32 %s10, 2
      // Predicated region
      $region45: #{multiscale_reaction_forward.1} parent=43 // pred_check
        %p1005 = pneg %p128
      $region46: #{multiscale_reaction_forward.1} parent=43 // pred_check_branch
        %1007 = sbr.rel (%p1005) target = $region48
      $region47: #{multiscale_reaction_forward.1} parent=43 // pred_region
        %s1008 = smul.u32 64, %s16
        %p1009 = scmp.lt.s32.totalorder %s1008, 127
        %s1010 = scalar_select %p1009, %s1008, 127
        %s1011 = smul.addr %s1010, 8
        %s1012 = scalar_lea.vmem %s4, %s1011
      $region48: #{multiscale_reaction_forward.1} parent=43 // pred_fallthru
        _
    $region44: #{multiscale_reaction_forward.1} parent=5 // pred_fallthru
      _
  $region6: #{multiscale_reaction_forward.1} parent=0 // loop_footer
    %s14 = sadd.s32 1, %s10
  $region7: #{multiscale_reaction_forward.1} parent=0 // loop_footer_branch
    %9 = sbr.rel target = $region3
  $region8: #{multiscale_reaction_forward.1} parent=0 // loop_exit
    _

</llo_original>
